<compile_context>
chip_gen: v7x
topology: tpu7x:2x2x1
jax: 0.10.0
libtpu: 0.0.40
codegen_flags: <defaults>
</compile_context>

<pallas_src>
import numpy as np

import jax
import jax.numpy as jnp
from jax.experimental import pallas as pl
from jax.experimental.pallas import tpu as pltpu

EPS = 1e-5


def _make_fused_basic_block_kernel(C):
    """Builds the fused kernel with the channel count C baked in statically."""

    def kernel(x_ref, a1_ref, a2_ref, bn_ref, out_ref, lhs_ref):
        """relu( BN2(conv2( relu(BN1(conv1(x))) )) + x ), fully fused in VMEM.

        x_ref   : (N, H, W*C)    f32   input rows (NHWC flattened over (w, c))
        a1_ref  : (3*W*C, W*C)   bf16  kh-stacked W-banded conv1 weights
        a2_ref  : (3*W*C, W*C)   bf16  kh-stacked W-banded conv2 weights
        bn_ref  : (4, W*C)       f32   [gamma1; beta1; gamma2; beta2], lane-tiled
        out_ref : (N*H, W*C)     f32   lane-dense output rows
        lhs_ref : (N, H, 3*W*C)  f32   VMEM scratch: im2col LHS (reused by both
                                       conv stages; halo strips stay zero)
        """
        N, H, WC = x_ref.shape
        W = WC // C
        M = N * H
        inv_cnt = 1.0 / float(N * H * W)           # 1 / (N*H*W) per channel

        # Halo zeroing, hoisted: row 0 of the kh=0 block and row H-1 of the
        # kh=2 block are the 1-pixel H padding; they are never overwritten.
        lhs_ref[:, 0:1, 0:WC] = jnp.zeros((N, 1, WC), jnp.float32)
        lhs_ref[:, H - 1:H, 2 * WC:3 * WC] = jnp.zeros((N, 1, WC), jnp.float32)

        def conv_bn(rows, a_ref, g, b):
            # rows: (N, H, W*C) f32 value.
            # Build the K-stacked im2col LHS: lane block kh of output row h
            # holds input row (h + kh - 1); W padding is baked into the band.
            lhs_ref[:, :, WC:2 * WC] = rows                        # kh = 1
            lhs_ref[:, 1:H, 0:WC] = rows[:, 0:H - 1, :]            # kh = 0
            lhs_ref[:, 0:H - 1, 2 * WC:3 * WC] = rows[:, 1:H, :]   # kh = 2

            # conv3x3 = ONE MXU matmul with K = 3*W*Cin = 384 (bf16 operands,
            # f32 accumulation).
            lhs = lhs_ref[...].reshape(M, 3 * WC).astype(jnp.bfloat16)
            acc = jnp.dot(lhs, a_ref[...],
                          preferred_element_type=jnp.float32)      # (M, W*C)

            # Single-pass BatchNorm batch stats (f32).  Row reduction on the
            # VPU, then a 4-step roll tree over the interleaved (w, c) lanes:
            # afterwards every lane holds its channel's total (already
            # broadcast), so no reduction/broadcast matmuls are needed.
            s = jnp.sum(acc, axis=0, keepdims=True)                # (1, W*C)
            ss = jnp.sum(acc * acc, axis=0, keepdims=True)         # (1, W*C)
            stats = jnp.concatenate([s, ss], axis=0)               # (2, W*C)
            shift = C
            while shift < WC:
                stats = stats + pltpu.roll(stats, shift=shift, axis=1)
                shift *= 2
            mean = stats[0:1, :] * inv_cnt                         # (1, W*C)
            var = stats[1:2, :] * inv_cnt - mean * mean
            scale = g * jax.lax.rsqrt(var + EPS)                   # (1, W*C)
            offset = b - mean * scale
            return acc * scale + offset                            # (M, W*C)

        x = x_ref[...]                                             # f32
        y1 = jnp.maximum(
            conv_bn(x, a1_ref, bn_ref[0:1, :], bn_ref[1:2, :]), 0.0)
        y2 = conv_bn(y1.reshape(N, H, WC), a2_ref,
                     bn_ref[2:3, :], bn_ref[3:4, :])
        y2 = y2 + x.reshape(M, WC)                  # identity shortcut (f32)
        out_ref[...] = jnp.maximum(y2, 0.0).astype(out_ref.dtype)

    return kernel


def _banded_conv_weights(w_oihw, W):
    """(Cout, Cin, 3, 3) torch layout -> (3*W*Cin, W*Cout) kh-stacked
    block-banded matrix; the 1-pixel W padding is baked into the band."""
    Co, Ci, KH, KW = w_oihw.shape
    band = np.zeros((KW, W, W), np.float32)
    for kw in range(KW):
        for w in range(W):
            wi = w + kw - 1
            if 0 <= wi < W:
                band[kw, wi, w] = 1.0
    # A[kh, wi, ci, w, co] = sum_kw band[kw, wi, w] * wt[co, ci, kh, kw]
    a5 = jnp.einsum('kiw,ochk->hicwo', jnp.asarray(band),
                    w_oihw.astype(jnp.float32))
    return a5.reshape(KH * W * Ci, W * Co)


@jax.jit
def basic_block_forward(x_nchw, w1_oihw, g1, b1, w2_oihw, g2, b2):
    """Forward of BasicBlock(in_planes=planes, stride=1): identity shortcut."""
    N, C, H, W = x_nchw.shape
    planes = w1_oihw.shape[0]
    WC = W * C
    WP = W * planes

    # NCHW -> lane-dense (N, H, W*C) rows (free reshape after NHWC transpose)
    x_rows = jnp.transpose(x_nchw, (0, 2, 3, 1)).reshape(N, H, WC)
    x_rows = x_rows.astype(jnp.float32)

    # kh-stacked banded conv weights, bf16 (halves the dominant weight DMA).
    a1 = _banded_conv_weights(w1_oihw, W).astype(jnp.bfloat16)   # (3*WC, WP)
    a2 = _banded_conv_weights(w2_oihw, W).astype(jnp.bfloat16)   # (3*WP, WP)

    # All four BN parameter vectors packed into one lane-tiled (4, W*C) array.
    bn = jnp.stack([jnp.tile(g1.astype(jnp.float32), W),
                    jnp.tile(b1.astype(jnp.float32), W),
                    jnp.tile(g2.astype(jnp.float32), W),
                    jnp.tile(b2.astype(jnp.float32), W)], axis=0)

    out = pl.pallas_call(
        _make_fused_basic_block_kernel(planes),
        out_shape=jax.ShapeDtypeStruct((N * H, WP), jnp.float32),
        grid=(1,),
        in_specs=[
            pl.BlockSpec((N, H, WC), lambda i: (0, 0, 0)),
            pl.BlockSpec((3 * WC, WP), lambda i: (0, 0)),
            pl.BlockSpec((3 * WP, WP), lambda i: (0, 0)),
            pl.BlockSpec((4, WP), lambda i: (0, 0)),
        ],
        out_specs=pl.BlockSpec((N * H, WP), lambda i: (0, 0)),
        scratch_shapes=[pltpu.VMEM((N, H, 3 * WC), jnp.float32)],
        compiler_params=pltpu.CompilerParams(
            dimension_semantics=("arbitrary",)),
    )(x_rows, a1, a2, bn)

    out = out.reshape(N, H, W, planes)
    return jnp.transpose(out, (0, 3, 1, 2))                    # back to NCHW


# ---------------- pure-JAX reference (for correctness check) ----------------
def _ref_forward(x, w1, g1, b1, w2, g2, b2):
    def conv(x, w):
        return jax.lax.conv_general_dilated(
            x, w, (1, 1), ((1, 1), (1, 1)),
            dimension_numbers=("NCHW", "OIHW", "NCHW"))

    def bn(x, g, b):
        mean = jnp.mean(x, axis=(0, 2, 3), keepdims=True)
        var = jnp.mean((x - mean) ** 2, axis=(0, 2, 3), keepdims=True)
        return ((x - mean) * jax.lax.rsqrt(var + EPS)
                * g.reshape(1, -1, 1, 1) + b.reshape(1, -1, 1, 1))

    out = jax.nn.relu(bn(conv(x, w1), g1, b1))
    out = bn(conv(out, w2), g2, b2)
    out = out + x          # identity shortcut (stride=1, in_planes==planes)
    return jax.nn.relu(out)


if __name__ == "__main__":
    # Small deterministic instantiation: in_planes = planes = 8, stride = 1.
    # W*C = 16*8 = 128 -> exactly one lane tile per row (lane-dense).
    N, C, H, W = 2, 8, 16, 16
    planes = C

    key = jax.random.PRNGKey(0)
    k_x, k_w1, k_w2, k_g1, k_b1, k_g2, k_b2 = jax.random.split(key, 7)

    x = jax.random.normal(k_x, (N, C, H, W), jnp.float32)
    w1 = jax.random.normal(k_w1, (planes, C, 3, 3), jnp.float32) * 0.1
    w2 = jax.random.normal(k_w2, (planes, planes, 3, 3), jnp.float32) * 0.1
    g1 = 1.0 + 0.1 * jax.random.normal(k_g1, (planes,), jnp.float32)
    b1 = 0.1 * jax.random.normal(k_b1, (planes,), jnp.float32)
    g2 = 1.0 + 0.1 * jax.random.normal(k_g2, (planes,), jnp.float32)
    b2 = 0.1 * jax.random.normal(k_b2, (planes,), jnp.float32)

    out = jax.block_until_ready(basic_block_forward(x, w1, g1, b1, w2, g2, b2))
    ref = jax.block_until_ready(_ref_forward(x, w1, g1, b1, w2, g2, b2))

    assert out.shape == (N, planes, H, W)
    # Tolerance relaxed vs. the all-f32 version: conv operands are bf16
    # (accumulation / BN stats / residual stay f32).
    assert jnp.allclose(out, ref, atol=3e-2, rtol=3e-2), (
        float(jnp.max(jnp.abs(out - ref))))

    print("KERNEL_OK")
</pallas_src>

<mosaic_0001>
module attributes {stable_mosaic.version = 11 : i64} {
  func.func @kernel(%arg0: i32, %arg1: memref<2x16x128xf32, #tpu.memory_space<vmem>>, %arg2: memref<384x128xbf16, #tpu.memory_space<vmem>>, %arg3: memref<384x128xbf16, #tpu.memory_space<vmem>>, %arg4: memref<4x128xf32, #tpu.memory_space<vmem>>, %arg5: memref<32x128xf32, #tpu.memory_space<vmem>>, %arg6: memref<2x16x384xf32, #tpu.memory_space<vmem>>) attributes {dimension_semantics = [#tpu.dimension_semantics<arbitrary>], iteration_bounds = array<i64: 1>, scalar_prefetch = 0 : i64, scratch_operands = 1 : i64, tpu.core_type = #tpu.core_type<tc>, window_params = [{pipeline_mode = #tpu.pipeline_mode<synchronous>, transform_indices = @transform_0, window_bounds = array<i64: 2, 16, 128>}, {pipeline_mode = #tpu.pipeline_mode<synchronous>, transform_indices = @transform_1, window_bounds = array<i64: 384, 128>}, {pipeline_mode = #tpu.pipeline_mode<synchronous>, transform_indices = @transform_2, window_bounds = array<i64: 384, 128>}, {pipeline_mode = #tpu.pipeline_mode<synchronous>, transform_indices = @transform_3, window_bounds = array<i64: 4, 128>}, {pipeline_mode = #tpu.pipeline_mode<synchronous>, transform_indices = @transform_4, window_bounds = array<i64: 32, 128>}]} {
    %cst = arith.constant 0.000000e+00 : f32
    %0 = vector.broadcast %cst : f32 to vector<2x1x128xf32>
    %c0 = arith.constant 0 : index
    %c0_0 = arith.constant 0 : index
    %c0_1 = arith.constant 0 : index
    %1 = vector.load %arg6[%c0, %c0_0, %c0_1] : memref<2x16x384xf32, #tpu.memory_space<vmem>>, vector<2x1x128xf32>
    tpu.vector_store %arg6[%c0, %c0_0, %c0_1], %0 {strides = array<i32>} : memref<2x16x384xf32, #tpu.memory_space<vmem>>, vector<2x1x128xf32>,
    %cst_2 = arith.constant 0.000000e+00 : f32
    %2 = vector.broadcast %cst_2 : f32 to vector<2x1x128xf32>
    %c0_3 = arith.constant 0 : index
    %c15 = arith.constant 15 : index
    %c256 = arith.constant 256 : index
    %3 = vector.load %arg6[%c0_3, %c15, %c256] : memref<2x16x384xf32, #tpu.memory_space<vmem>>, vector<2x1x128xf32>
    tpu.vector_store %arg6[%c0_3, %c15, %c256], %2 {strides = array<i32>} : memref<2x16x384xf32, #tpu.memory_space<vmem>>, vector<2x1x128xf32>,
    %c0_4 = arith.constant 0 : index
    %c0_5 = arith.constant 0 : index
    %c0_6 = arith.constant 0 : index
    %4 = vector.load %arg1[%c0_4, %c0_5, %c0_6] : memref<2x16x128xf32, #tpu.memory_space<vmem>>, vector<2x16x128xf32>
    %c0_7 = arith.constant 0 : index
    %c0_8 = arith.constant 0 : index
    %5 = vector.load %arg4[%c0_7, %c0_8] : memref<4x128xf32, #tpu.memory_space<vmem>>, vector<1x128xf32>
    %c1 = arith.constant 1 : index
    %c0_9 = arith.constant 0 : index
    %6 = vector.load %arg4[%c1, %c0_9] : memref<4x128xf32, #tpu.memory_space<vmem>>, vector<1x128xf32>
    %c0_10 = arith.constant 0 : index
    %c0_11 = arith.constant 0 : index
    %c128 = arith.constant 128 : index
    %7 = vector.load %arg6[%c0_10, %c0_11, %c128] : memref<2x16x384xf32, #tpu.memory_space<vmem>>, vector<2x16x128xf32>
    tpu.vector_store %arg6[%c0_10, %c0_11, %c128], %4 {strides = array<i32>} : memref<2x16x384xf32, #tpu.memory_space<vmem>>, vector<2x16x128xf32>,
    %8 = vector.extract_strided_slice %4 {offsets = [0, 0, 0], sizes = [2, 15, 128], strides = [1, 1, 1]} : vector<2x16x128xf32> to vector<2x15x128xf32>
    %c0_12 = arith.constant 0 : index
    %c1_13 = arith.constant 1 : index
    %c0_14 = arith.constant 0 : index
    %9 = vector.load %arg6[%c0_12, %c1_13, %c0_14] : memref<2x16x384xf32, #tpu.memory_space<vmem>>, vector<2x15x128xf32>
    tpu.vector_store %arg6[%c0_12, %c1_13, %c0_14], %8 {strides = array<i32>} : memref<2x16x384xf32, #tpu.memory_space<vmem>>, vector<2x15x128xf32>,
    %10 = vector.extract_strided_slice %4 {offsets = [0, 1, 0], sizes = [2, 15, 128], strides = [1, 1, 1]} : vector<2x16x128xf32> to vector<2x15x128xf32>
    %c0_15 = arith.constant 0 : index
    %c0_16 = arith.constant 0 : index
    %c256_17 = arith.constant 256 : index
    %11 = vector.load %arg6[%c0_15, %c0_16, %c256_17] : memref<2x16x384xf32, #tpu.memory_space<vmem>>, vector<2x15x128xf32>
    tpu.vector_store %arg6[%c0_15, %c0_16, %c256_17], %10 {strides = array<i32>} : memref<2x16x384xf32, #tpu.memory_space<vmem>>, vector<2x15x128xf32>,
    %c0_18 = arith.constant 0 : index
    %c0_19 = arith.constant 0 : index
    %c0_20 = arith.constant 0 : index
    %12 = vector.load %arg6[%c0_18, %c0_19, %c0_20] : memref<2x16x384xf32, #tpu.memory_space<vmem>>, vector<2x16x384xf32>
    %13 = vector.shape_cast %12 : vector<2x16x384xf32> to vector<32x384xf32>
    %14 = arith.truncf %13 : vector<32x384xf32> to vector<32x384xbf16>
    %c0_21 = arith.constant 0 : index
    %c0_22 = arith.constant 0 : index
    %15 = vector.load %arg2[%c0_21, %c0_22] : memref<384x128xbf16, #tpu.memory_space<vmem>>, vector<384x128xbf16>
    %cst_23 = arith.constant dense<0.000000e+00> : vector<32x128xf32>
    %16 = tpu.matmul %14, %15, %cst_23 {dimension_numbers = #tpu.dot_dimension_numbers<[1], [0], [0], [1], [0, 0, 1, 1], [], []>} : vector<32x384xbf16>, vector<384x128xbf16>, vector<32x128xf32> -> vector<32x128xf32>
    %cst_24 = arith.constant dense<0.000000e+00> : vector<128xf32>
    %17 = vector.multi_reduction <add>, %16, %cst_24 [0] : vector<32x128xf32> to vector<128xf32>
    %18 = vector.shape_cast %17 : vector<128xf32> to vector<1x128xf32>
    %19 = arith.mulf %16, %16 : vector<32x128xf32>
    %cst_25 = arith.constant dense<0.000000e+00> : vector<128xf32>
    %20 = vector.multi_reduction <add>, %19, %cst_25 [0] : vector<32x128xf32> to vector<128xf32>
    %21 = vector.shape_cast %20 : vector<128xf32> to vector<1x128xf32>
    %22 = tpu.concatenate %18, %21 in 0 : vector<1x128xf32>, vector<1x128xf32> -> vector<2x128xf32>
    %c8_i32 = arith.constant 8 : i32
    %23 = tpu.dynamic_rotate %22 by %c8_i32 dim 1 : vector<2x128xf32>, i32 -> vector<2x128xf32>
    %24 = arith.addf %22, %23 : vector<2x128xf32>
    %c16_i32 = arith.constant 16 : i32
    %25 = tpu.dynamic_rotate %24 by %c16_i32 dim 1 : vector<2x128xf32>, i32 -> vector<2x128xf32>
    %26 = arith.addf %24, %25 : vector<2x128xf32>
    %c32_i32 = arith.constant 32 : i32
    %27 = tpu.dynamic_rotate %26 by %c32_i32 dim 1 : vector<2x128xf32>, i32 -> vector<2x128xf32>
    %28 = arith.addf %26, %27 : vector<2x128xf32>
    %c64_i32 = arith.constant 64 : i32
    %29 = tpu.dynamic_rotate %28 by %c64_i32 dim 1 : vector<2x128xf32>, i32 -> vector<2x128xf32>
    %30 = arith.addf %28, %29 : vector<2x128xf32>
    %31 = vector.extract_strided_slice %30 {offsets = [0, 0], sizes = [1, 128], strides = [1, 1]} : vector<2x128xf32> to vector<1x128xf32>
    %cst_26 = arith.constant 0.001953125 : f32
    %32 = vector.broadcast %cst_26 : f32 to vector<1x128xf32>
    %33 = arith.mulf %31, %32 : vector<1x128xf32>
    %34 = vector.extract_strided_slice %30 {offsets = [1, 0], sizes = [1, 128], strides = [1, 1]} : vector<2x128xf32> to vector<1x128xf32>
    %cst_27 = arith.constant 0.001953125 : f32
    %35 = vector.broadcast %cst_27 : f32 to vector<1x128xf32>
    %36 = arith.mulf %34, %35 : vector<1x128xf32>
    %37 = arith.mulf %33, %33 : vector<1x128xf32>
    %38 = arith.subf %36, %37 : vector<1x128xf32>
    %cst_28 = arith.constant 9.99999974E-6 : f32
    %39 = vector.broadcast %cst_28 : f32 to vector<1x128xf32>
    %40 = arith.addf %38, %39 : vector<1x128xf32>
    %41 = math.rsqrt %40 : vector<1x128xf32>
    %42 = arith.mulf %5, %41 : vector<1x128xf32>
    %43 = arith.mulf %33, %42 : vector<1x128xf32>
    %44 = arith.subf %6, %43 : vector<1x128xf32>
    %45 = vector.broadcast %42 : vector<1x128xf32> to vector<32x128xf32>
    %46 = arith.mulf %16, %45 : vector<32x128xf32>
    %47 = vector.broadcast %44 : vector<1x128xf32> to vector<32x128xf32>
    %48 = arith.addf %46, %47 : vector<32x128xf32>
    %cst_29 = arith.constant 0.000000e+00 : f32
    %49 = vector.broadcast %cst_29 : f32 to vector<32x128xf32>
    %50 = arith.maximumf %48, %49 : vector<32x128xf32>
    %51 = vector.shape_cast %50 : vector<32x128xf32> to vector<2x16x128xf32>
    %c2 = arith.constant 2 : index
    %c0_30 = arith.constant 0 : index
    %52 = vector.load %arg4[%c2, %c0_30] : memref<4x128xf32, #tpu.memory_space<vmem>>, vector<1x128xf32>
    %c3 = arith.constant 3 : index
    %c0_31 = arith.constant 0 : index
    %53 = vector.load %arg4[%c3, %c0_31] : memref<4x128xf32, #tpu.memory_space<vmem>>, vector<1x128xf32>
    %c0_32 = arith.constant 0 : index
    %c0_33 = arith.constant 0 : index
    %c128_34 = arith.constant 128 : index
    %54 = vector.load %arg6[%c0_32, %c0_33, %c128_34] : memref<2x16x384xf32, #tpu.memory_space<vmem>>, vector<2x16x128xf32>
    tpu.vector_store %arg6[%c0_32, %c0_33, %c128_34], %51 {strides = array<i32>} : memref<2x16x384xf32, #tpu.memory_space<vmem>>, vector<2x16x128xf32>,
    %55 = vector.extract_strided_slice %51 {offsets = [0, 0, 0], sizes = [2, 15, 128], strides = [1, 1, 1]} : vector<2x16x128xf32> to vector<2x15x128xf32>
    %c0_35 = arith.constant 0 : index
    %c1_36 = arith.constant 1 : index
    %c0_37 = arith.constant 0 : index
    %56 = vector.load %arg6[%c0_35, %c1_36, %c0_37] : memref<2x16x384xf32, #tpu.memory_space<vmem>>, vector<2x15x128xf32>
    tpu.vector_store %arg6[%c0_35, %c1_36, %c0_37], %55 {strides = array<i32>} : memref<2x16x384xf32, #tpu.memory_space<vmem>>, vector<2x15x128xf32>,
    %57 = vector.extract_strided_slice %51 {offsets = [0, 1, 0], sizes = [2, 15, 128], strides = [1, 1, 1]} : vector<2x16x128xf32> to vector<2x15x128xf32>
    %c0_38 = arith.constant 0 : index
    %c0_39 = arith.constant 0 : index
    %c256_40 = arith.constant 256 : index
    %58 = vector.load %arg6[%c0_38, %c0_39, %c256_40] : memref<2x16x384xf32, #tpu.memory_space<vmem>>, vector<2x15x128xf32>
    tpu.vector_store %arg6[%c0_38, %c0_39, %c256_40], %57 {strides = array<i32>} : memref<2x16x384xf32, #tpu.memory_space<vmem>>, vector<2x15x128xf32>,
    %c0_41 = arith.constant 0 : index
    %c0_42 = arith.constant 0 : index
    %c0_43 = arith.constant 0 : index
    %59 = vector.load %arg6[%c0_41, %c0_42, %c0_43] : memref<2x16x384xf32, #tpu.memory_space<vmem>>, vector<2x16x384xf32>
    %60 = vector.shape_cast %59 : vector<2x16x384xf32> to vector<32x384xf32>
    %61 = arith.truncf %60 : vector<32x384xf32> to vector<32x384xbf16>
    %c0_44 = arith.constant 0 : index
    %c0_45 = arith.constant 0 : index
    %62 = vector.load %arg3[%c0_44, %c0_45] : memref<384x128xbf16, #tpu.memory_space<vmem>>, vector<384x128xbf16>
    %cst_46 = arith.constant dense<0.000000e+00> : vector<32x128xf32>
    %63 = tpu.matmul %61, %62, %cst_46 {dimension_numbers = #tpu.dot_dimension_numbers<[1], [0], [0], [1], [0, 0, 1, 1], [], []>} : vector<32x384xbf16>, vector<384x128xbf16>, vector<32x128xf32> -> vector<32x128xf32>
    %cst_47 = arith.constant dense<0.000000e+00> : vector<128xf32>
    %64 = vector.multi_reduction <add>, %63, %cst_47 [0] : vector<32x128xf32> to vector<128xf32>
    %65 = vector.shape_cast %64 : vector<128xf32> to vector<1x128xf32>
    %66 = arith.mulf %63, %63 : vector<32x128xf32>
    %cst_48 = arith.constant dense<0.000000e+00> : vector<128xf32>
    %67 = vector.multi_reduction <add>, %66, %cst_48 [0] : vector<32x128xf32> to vector<128xf32>
    %68 = vector.shape_cast %67 : vector<128xf32> to vector<1x128xf32>
    %69 = tpu.concatenate %65, %68 in 0 : vector<1x128xf32>, vector<1x128xf32> -> vector<2x128xf32>
    %c8_i32_49 = arith.constant 8 : i32
    %70 = tpu.dynamic_rotate %69 by %c8_i32_49 dim 1 : vector<2x128xf32>, i32 -> vector<2x128xf32>
    %71 = arith.addf %69, %70 : vector<2x128xf32>
    %c16_i32_50 = arith.constant 16 : i32
    %72 = tpu.dynamic_rotate %71 by %c16_i32_50 dim 1 : vector<2x128xf32>, i32 -> vector<2x128xf32>
    %73 = arith.addf %71, %72 : vector<2x128xf32>
    %c32_i32_51 = arith.constant 32 : i32
    %74 = tpu.dynamic_rotate %73 by %c32_i32_51 dim 1 : vector<2x128xf32>, i32 -> vector<2x128xf32>
    %75 = arith.addf %73, %74 : vector<2x128xf32>
    %c64_i32_52 = arith.constant 64 : i32
    %76 = tpu.dynamic_rotate %75 by %c64_i32_52 dim 1 : vector<2x128xf32>, i32 -> vector<2x128xf32>
    %77 = arith.addf %75, %76 : vector<2x128xf32>
    %78 = vector.extract_strided_slice %77 {offsets = [0, 0], sizes = [1, 128], strides = [1, 1]} : vector<2x128xf32> to vector<1x128xf32>
    %cst_53 = arith.constant 0.001953125 : f32
    %79 = vector.broadcast %cst_53 : f32 to vector<1x128xf32>
    %80 = arith.mulf %78, %79 : vector<1x128xf32>
    %81 = vector.extract_strided_slice %77 {offsets = [1, 0], sizes = [1, 128], strides = [1, 1]} : vector<2x128xf32> to vector<1x128xf32>
    %cst_54 = arith.constant 0.001953125 : f32
    %82 = vector.broadcast %cst_54 : f32 to vector<1x128xf32>
    %83 = arith.mulf %81, %82 : vector<1x128xf32>
    %84 = arith.mulf %80, %80 : vector<1x128xf32>
    %85 = arith.subf %83, %84 : vector<1x128xf32>
    %cst_55 = arith.constant 9.99999974E-6 : f32
    %86 = vector.broadcast %cst_55 : f32 to vector<1x128xf32>
    %87 = arith.addf %85, %86 : vector<1x128xf32>
    %88 = math.rsqrt %87 : vector<1x128xf32>
    %89 = arith.mulf %52, %88 : vector<1x128xf32>
    %90 = arith.mulf %80, %89 : vector<1x128xf32>
    %91 = arith.subf %53, %90 : vector<1x128xf32>
    %92 = vector.broadcast %89 : vector<1x128xf32> to vector<32x128xf32>
    %93 = arith.mulf %63, %92 : vector<32x128xf32>
    %94 = vector.broadcast %91 : vector<1x128xf32> to vector<32x128xf32>
    %95 = arith.addf %93, %94 : vector<32x128xf32>
    %96 = vector.shape_cast %4 : vector<2x16x128xf32> to vector<32x128xf32>
    %97 = arith.addf %95, %96 : vector<32x128xf32>
    %cst_56 = arith.constant 0.000000e+00 : f32
    %98 = vector.broadcast %cst_56 : f32 to vector<32x128xf32>
    %99 = arith.maximumf %97, %98 : vector<32x128xf32>
    %c0_57 = arith.constant 0 : index
    %c0_58 = arith.constant 0 : index
    %100 = vector.load %arg5[%c0_57, %c0_58] : memref<32x128xf32, #tpu.memory_space<vmem>>, vector<32x128xf32>
    tpu.vector_store %arg5[%c0_57, %c0_58], %99 {strides = array<i32>} : memref<32x128xf32, #tpu.memory_space<vmem>>, vector<32x128xf32>,
    return
  }
  func.func @transform_0(%arg0: i32) -> (i32, i32, i32) {
    %c0_i32 = arith.constant 0 : i32
    %c0_i32_0 = arith.constant 0 : i32
    %c0_i32_1 = arith.constant 0 : i32
    %c0_i32_2 = arith.constant 0 : i32
    return %c0_i32, %c0_i32_0, %c0_i32_1 : i32, i32, i32
  }
  func.func @transform_1(%arg0: i32) -> (i32, i32) {
    %c0_i32 = arith.constant 0 : i32
    %c0_i32_0 = arith.constant 0 : i32
    %c0_i32_1 = arith.constant 0 : i32
    return %c0_i32, %c0_i32_0 : i32, i32
  }
  func.func @transform_2(%arg0: i32) -> (i32, i32) {
    %c0_i32 = arith.constant 0 : i32
    %c0_i32_0 = arith.constant 0 : i32
    %c0_i32_1 = arith.constant 0 : i32
    return %c0_i32, %c0_i32_0 : i32, i32
  }
  func.func @transform_3(%arg0: i32) -> (i32, i32) {
    %c0_i32 = arith.constant 0 : i32
    %c0_i32_0 = arith.constant 0 : i32
    %c0_i32_1 = arith.constant 0 : i32
    return %c0_i32, %c0_i32_0 : i32, i32
  }
  func.func @transform_4(%arg0: i32) -> (i32, i32) {
    %c0_i32 = arith.constant 0 : i32
    %c0_i32_0 = arith.constant 0 : i32
    %c0_i32_1 = arith.constant 0 : i32
    return %c0_i32, %c0_i32_0 : i32, i32
  }
}

</mosaic_0001>

<llo_original>
// kernel: tile.23
$region0: #{tile.23}
  #allocation0 [shape = 's32[1]{0}', space=sflag, size = 0x4, scoped, tag = 'scoped memory for tile.23']
  %s0 = inlined_call_operand.vmem [shape: f32[8], index: 0, kind: input, shape index: {}]
  %s1 = inlined_call_operand.vmem [shape: f32[16,8], index: 1, kind: output, shape index: {}]
  // Predicated region
  $region2: #{tile.23} parent=0 // pred_check
    _
  $region3: #{tile.23} parent=0 // pred_check_branch
    %3 = sbr.rel (0) target = $region5
  $region4: #{tile.23} parent=0 // pred_region
    _
  $region5: #{tile.23} parent=0 // pred_fallthru
    _
  %v4 = vld [vmem:[%s0] ss:$0 sm:$0xff]
  %5 = vst [vmem:[%s1] sm:$0xff] %v4
  %s6 = scalar_lea.vmem %s1, 8
  %7 = vst [vmem:[%s6] sm:$0xff] %v4

// kernel: tile.36
$region0: #{tile.36}
  %s0 = inlined_call_operand.vmem [shape: f32[16,8], index: 0, kind: input, shape index: {}]
  %s1 = inlined_call_operand.vmem [shape: f32[1,128], index: 1, kind: output, shape index: {}]
  $region1: #{tile.36} parent=0
    #allocation0 [shape = 'u8[4096]{0}', space=vmem, size = 0x1000, scoped, tag = 'scoped mem for output reshape']
    %v2 = vld [vmem:[%s0] sm:$0x1]
    %vm3 = vcmask 64512
    %4 = vst.msk [vmem:[#allocation0] sm:$0x1] %vm3, %v2
    %s5 = scalar_lea.vmem %s0, 15
    %v6 = vld [vmem:[%s5] sm:$0x1]
    %7 = vrot.lane.b32.xlu0 %v6, 120
    %v8 = vpop.permute.xlu0 %7
    %vm9 = vcmask 1048512
    %10 = vst.msk [vmem:[#allocation0] sm:$0x1] %vm9, %v8
    %s11 = scalar_lea.vmem %s0, 14
    %v12 = vld [vmem:[%s11] sm:$0x1]
    %13 = vrot.lane.b32.xlu0 %v12, 112
    %v14 = vpop.permute.xlu0 %13
    %vm15 = vcmask 982912
    %16 = vst.msk [vmem:[#allocation0] sm:$0x1] %vm15, %v14
    %s17 = scalar_lea.vmem %s0, 13
    %v18 = vld [vmem:[%s17] sm:$0x1]
    %19 = vrot.lane.b32.xlu0 %v18, 104
    %v20 = vpop.permute.xlu0 %19
    %vm21 = vcmask 917312
    %22 = vst.msk [vmem:[#allocation0] sm:$0x1] %vm21, %v20
    %s23 = scalar_lea.vmem %s0, 12
    %v24 = vld [vmem:[%s23] sm:$0x1]
    %25 = vrot.lane.b32.xlu0 %v24, 96
    %v26 = vpop.permute.xlu0 %25
    %vm27 = vcmask 851712
    %28 = vst.msk [vmem:[#allocation0] sm:$0x1] %vm27, %v26
    %s29 = scalar_lea.vmem %s0, 11
    %v30 = vld [vmem:[%s29] sm:$0x1]
    %31 = vrot.lane.b32.xlu0 %v30, 88
    %v32 = vpop.permute.xlu0 %31
    %vm33 = vcmask 786112
    %34 = vst.msk [vmem:[#allocation0] sm:$0x1] %vm33, %v32
    %s35 = scalar_lea.vmem %s0, 10
    %v36 = vld [vmem:[%s35] sm:$0x1]
    %37 = vrot.lane.b32.xlu0 %v36, 80
    %v38 = vpop.permute.xlu0 %37
    %vm39 = vcmask 720512
    %40 = vst.msk [vmem:[#allocation0] sm:$0x1] %vm39, %v38
    %s41 = scalar_lea.vmem %s0, 9
    %v42 = vld [vmem:[%s41] sm:$0x1]
    %43 = vrot.lane.b32.xlu0 %v42, 72
    %v44 = vpop.permute.xlu0 %43
    %vm45 = vcmask 654912
    %46 = vst.msk [vmem:[#allocation0] sm:$0x1] %vm45, %v44
    %s47 = scalar_lea.vmem %s0, 8
    %v48 = vld [vmem:[%s47] sm:$0x1]
    %49 = vrot.lane.b32.xlu0 %v48, 64
    %v50 = vpop.permute.xlu0 %49
    %vm51 = vcmask 589312
    %52 = vst.msk [vmem:[#allocation0] sm:$0x1] %vm51, %v50
    %s53 = scalar_lea.vmem %s0, 7
    %v54 = vld [vmem:[%s53] sm:$0x1]
    %55 = vrot.lane.b32.xlu0 %v54, 56
    %v56 = vpop.permute.xlu0 %55
    %vm57 = vcmask 523712
    %58 = vst.msk [vmem:[#allocation0] sm:$0x1] %vm57, %v56
    %s59 = scalar_lea.vmem %s0, 6
    %v60 = vld [vmem:[%s59] sm:$0x1]
    %61 = vrot.lane.b32.xlu0 %v60, 48
    %v62 = vpop.permute.xlu0 %61
    %vm63 = vcmask 458112
    %64 = vst.msk [vmem:[#allocation0] sm:$0x1] %vm63, %v62
    %s65 = scalar_lea.vmem %s0, 5
    %v66 = vld [vmem:[%s65] sm:$0x1]
    %67 = vrot.lane.b32.xlu0 %v66, 40
    %v68 = vpop.permute.xlu0 %67
    %vm69 = vcmask 392512
    %70 = vst.msk [vmem:[#allocation0] sm:$0x1] %vm69, %v68
    %s71 = scalar_lea.vmem %s0, 4
    %v72 = vld [vmem:[%s71] sm:$0x1]
    %73 = vrot.lane.b32.xlu0 %v72, 32
    %v74 = vpop.permute.xlu0 %73
    %vm75 = vcmask 326912
    %76 = vst.msk [vmem:[#allocation0] sm:$0x1] %vm75, %v74
    %s77 = scalar_lea.vmem %s0, 3
    %v78 = vld [vmem:[%s77] sm:$0x1]
    %79 = vrot.lane.b32.xlu0 %v78, 24
    %v80 = vpop.permute.xlu0 %79
    %vm81 = vcmask 261312
    %82 = vst.msk [vmem:[#allocation0] sm:$0x1] %vm81, %v80
    %s83 = scalar_lea.vmem %s0, 2
    %v84 = vld [vmem:[%s83] sm:$0x1]
    %85 = vrot.lane.b32.xlu0 %v84, 16
    %v86 = vpop.permute.xlu0 %85
    %vm87 = vcmask 195712
    %88 = vst.msk [vmem:[#allocation0] sm:$0x1] %vm87, %v86
    %s89 = scalar_lea.vmem %s0, 1
    %v90 = vld [vmem:[%s89] sm:$0x1]
    %91 = vrot.lane.b32.xlu0 %v90, 8
    %v92 = vpop.permute.xlu0 %91
    %vm93 = vcmask 130112
    %94 = vst.msk [vmem:[#allocation0] sm:$0x1] %vm93, %v92
    %s96 = sshllo.u32 0, 1
    %v98 = vld [vmem:[#allocation0] sm:%s96]
    %s99 = sshllo.u32 0, 1
    %100 = vst [vmem:[%s1] sm:%s99] %v98

// kernel: basic_block_forward.1
$region0: #{basic_block_forward.1}
  #allocation0 [shape = 'u32[]', space=smem, size = 0x4, offset = 0x4, fixed_abs, tag = 'smem constant byte address 0x4 - core index']
  #allocation1 [shape = 'u32[144,128]{1,0:T(1,128)}', space=vmem, size = 0x12000, scoped, tag = 'internal scratch']
  #allocation2 [shape = 'f32[2,16,384]{2,1,0:T(8,128)}', space=vmem, size = 0xc000, scoped, tag = 'scratch operand']
  %s0 = inlined_call_operand.vmem [shape: f32[2,16,128], index: 0, kind: input, shape index: {}]
  %s1 = inlined_call_operand.vmem [shape: bf16[384,128], index: 1, kind: input, shape index: {}]
  %s2 = inlined_call_operand.vmem [shape: bf16[384,128], index: 2, kind: input, shape index: {}]
  %s3 = inlined_call_operand.vmem [shape: f32[4,128], index: 3, kind: input, shape index: {}]
  %s4 = inlined_call_operand.vmem [shape: f32[32,128], index: 4, kind: output, shape index: {}]
  %s5 = sld [smem:[#allocation0]]
  $region26: #{basic_block_forward.1} parent=0
    _
  %s7 = ssub.s32 1, %s5
  %s8 = scalar_select 0, %s7, %s5
  // Predicated region
  $region2: #{basic_block_forward.1} parent=0 // pred_check
    _
  $region3: #{basic_block_forward.1} parent=0 // pred_check_branch
    %10 = sbr.rel (0) target = $region5
  $region4: #{basic_block_forward.1} parent=0 // pred_region
    _
  $region5: #{basic_block_forward.1} parent=0 // pred_fallthru
    _
  // Predicated region
  $region6: #{basic_block_forward.1} parent=0 // pred_check
    _
  $region7: #{basic_block_forward.1} parent=0 // pred_check_branch
    %12 = sbr.rel (0) target = $region9
  $region8: #{basic_block_forward.1} parent=0 // pred_region
    _
  $region9: #{basic_block_forward.1} parent=0 // pred_fallthru
    _
  // Predicated region
  $region10: #{basic_block_forward.1} parent=0 // pred_check
    _
  $region11: #{basic_block_forward.1} parent=0 // pred_check_branch
    %14 = sbr.rel (0) target = $region13
  $region12: #{basic_block_forward.1} parent=0 // pred_region
    _
  $region13: #{basic_block_forward.1} parent=0 // pred_fallthru
    _
  // Predicated region
  $region14: #{basic_block_forward.1} parent=0 // pred_check
    _
  $region15: #{basic_block_forward.1} parent=0 // pred_check_branch
    %16 = sbr.rel (0) target = $region17
  $region16: #{basic_block_forward.1} parent=0 // pred_region
    _
  $region17: #{basic_block_forward.1} parent=0 // pred_fallthru
    _
  %18 = vst [vmem:[#allocation2] sm:$0x1] 0.0
  %19 = vst [vmem:[#allocation2 + $0x30] sm:$0x1] 0.0
  %20 = vst [vmem:[#allocation2 + $0x2f] sm:$0x1] 0.0
  %21 = vst [vmem:[#allocation2 + $0x5f] sm:$0x1] 0.0
  %v22 = vld [vmem:[%s0] sm:$0xff]
  %v23 = vld [vmem:[%s0 + $0x8] sm:$0xff]
  %v24 = vld [vmem:[%s0 + $0x10] sm:$0xff]
  %v25 = vld [vmem:[%s0 + $0x18] sm:$0xff]
  %v26 = vld [vmem:[%s3] sm:$0x1]
  %v27 = vld [vmem:[%s3 + $0x1] sm:$0x1]
  %28 = vst [vmem:[#allocation2 + $0x8] sm:$0xff] %v22
  %29 = vst [vmem:[#allocation2 + $0x20] sm:$0xff] %v23
  %30 = vst [vmem:[#allocation2 + $0x38] sm:$0xff] %v24
  %31 = vst [vmem:[#allocation2 + $0x50] sm:$0xff] %v25
  %vm36 = vcmask 1040384
  %v37 = vrot.slane %v22, 7
  %v38 = vrot.slane %v23, 7
  %v39 = vsel %vm36, %v37, %v38
  %v40 = vrot.slane %v24, 7
  %v41 = vrot.slane %v25, 7
  %v42 = vsel %vm36, %v40, %v41
  %47 = vst [vmem:[#allocation2] sm:$0xfe] %v37
  %48 = vst [vmem:[#allocation2 + $0x18] sm:$0xff] %v39
  %49 = vst [vmem:[#allocation2 + $0x30] sm:$0xfe] %v40
  %50 = vst [vmem:[#allocation2 + $0x48] sm:$0xff] %v42
  %vm51 = vcmask 1046528
  %v52 = vrot.slane %v22, 1
  %v53 = vrot.slane %v23, 1
  %v54 = vsel %vm51, %v52, %v53
  %v55 = vrot.slane %v24, 1
  %v56 = vrot.slane %v25, 1
  %v57 = vsel %vm51, %v55, %v56
  %62 = vst [vmem:[#allocation2 + $0x10] sm:$0xff] %v54
  %63 = vst [vmem:[#allocation2 + $0x28] sm:$0x7f] %v53
  %64 = vst [vmem:[#allocation2 + $0x40] sm:$0xff] %v57
  %65 = vst [vmem:[#allocation2 + $0x58] sm:$0x7f] %v56
  %v66 = vld [vmem:[#allocation2] sm:$0xff]
  %v67 = vld [vmem:[#allocation2 + $0x8] sm:$0xff]
  %v68 = vld [vmem:[#allocation2 + $0x10] sm:$0xff]
  %v69 = vld [vmem:[#allocation2 + $0x18] sm:$0xff]
  %v70 = vld [vmem:[#allocation2 + $0x20] sm:$0xff]
  %v71 = vld [vmem:[#allocation2 + $0x28] sm:$0xff]
  %v72 = vld [vmem:[#allocation2 + $0x30] sm:$0xff]
  %v73 = vld [vmem:[#allocation2 + $0x38] sm:$0xff]
  %v74 = vld [vmem:[#allocation2 + $0x40] sm:$0xff]
  %v75 = vld [vmem:[#allocation2 + $0x48] sm:$0xff]
  %v76 = vld [vmem:[#allocation2 + $0x50] sm:$0xff]
  %v77 = vld [vmem:[#allocation2 + $0x58] sm:$0xff]
  %v78 = vpack.c.bf16 %v69, %v66
  %v79 = vpack.c.bf16 %v70, %v67
  %v80 = vpack.c.bf16 %v71, %v68
  %v81 = vpack.c.bf16 %v75, %v72
  %v82 = vpack.c.bf16 %v76, %v73
  %v83 = vpack.c.bf16 %v77, %v74
  %v84 = vld [vmem:[%s1] sm:$0xf]
  %v85 = vld [vmem:[%s1 + $0x4] sm:$0xf]
  %v86 = vld [vmem:[%s1 + $0x8] sm:$0xf]
  %v87 = vld [vmem:[%s1 + $0xc] sm:$0xf]
  %v88 = vld [vmem:[%s1 + $0x10] sm:$0xf]
  %v89 = vld [vmem:[%s1 + $0x14] sm:$0xf]
  %v90 = vld [vmem:[%s1 + $0x18] sm:$0xf]
  %v91 = vld [vmem:[%s1 + $0x1c] sm:$0xf]
  %v92 = vld [vmem:[%s1 + $0x20] sm:$0xf]
  %v93 = vld [vmem:[%s1 + $0x24] sm:$0xf]
  %v94 = vld [vmem:[%s1 + $0x28] sm:$0xf]
  %v95 = vld [vmem:[%s1 + $0x2c] sm:$0xf]
  %v96 = vld [vmem:[%s1 + $0x30] sm:$0xf]
  %v97 = vld [vmem:[%s1 + $0x34] sm:$0xf]
  %v98 = vld [vmem:[%s1 + $0x38] sm:$0xf]
  %v99 = vld [vmem:[%s1 + $0x3c] sm:$0xf]
  %v100 = vld [vmem:[%s1 + $0x40] sm:$0xf]
  %v101 = vld [vmem:[%s1 + $0x44] sm:$0xf]
  %v102 = vld [vmem:[%s1 + $0x48] sm:$0xf]
  %v103 = vld [vmem:[%s1 + $0x4c] sm:$0xf]
  %v104 = vld [vmem:[%s1 + $0x50] sm:$0xf]
  %v105 = vld [vmem:[%s1 + $0x54] sm:$0xf]
  %v106 = vld [vmem:[%s1 + $0x58] sm:$0xf]
  %v107 = vld [vmem:[%s1 + $0x5c] sm:$0xf]
  %v108 = vld [vmem:[%s1 + $0x60] sm:$0xf]
  %v109 = vld [vmem:[%s1 + $0x64] sm:$0xf]
  %v110 = vld [vmem:[%s1 + $0x68] sm:$0xf]
  %v111 = vld [vmem:[%s1 + $0x6c] sm:$0xf]
  %v112 = vld [vmem:[%s1 + $0x70] sm:$0xf]
  %v113 = vld [vmem:[%s1 + $0x74] sm:$0xf]
  %v114 = vld [vmem:[%s1 + $0x78] sm:$0xf]
  %v115 = vld [vmem:[%s1 + $0x7c] sm:$0xf]
  %v116 = vld [vmem:[%s1 + $0x80] sm:$0xf]
  %v117 = vld [vmem:[%s1 + $0x84] sm:$0xf]
  %v118 = vld [vmem:[%s1 + $0x88] sm:$0xf]
  %v119 = vld [vmem:[%s1 + $0x8c] sm:$0xf]
  %v120 = vld [vmem:[%s1 + $0x90] sm:$0xf]
  %v121 = vld [vmem:[%s1 + $0x94] sm:$0xf]
  %v122 = vld [vmem:[%s1 + $0x98] sm:$0xf]
  %v123 = vld [vmem:[%s1 + $0x9c] sm:$0xf]
  %v124 = vld [vmem:[%s1 + $0xa0] sm:$0xf]
  %v125 = vld [vmem:[%s1 + $0xa4] sm:$0xf]
  %v126 = vld [vmem:[%s1 + $0xa8] sm:$0xf]
  %v127 = vld [vmem:[%s1 + $0xac] sm:$0xf]
  %v128 = vld [vmem:[%s1 + $0xb0] sm:$0xf]
  %v129 = vld [vmem:[%s1 + $0xb4] sm:$0xf]
  %v130 = vld [vmem:[%s1 + $0xb8] sm:$0xf]
  %v131 = vld [vmem:[%s1 + $0xbc] sm:$0xf]
  %v180 = vunpack.c.l.b16 %v84
  %v181 = vunpack.c.l.b16 %v85
  %v182 = vunpack.c.l.b16 %v86
  %v183 = vunpack.c.l.b16 %v87
  %v184 = vunpack.c.l.b16 %v88
  %v185 = vunpack.c.l.b16 %v89
  %v186 = vunpack.c.l.b16 %v90
  %v187 = vunpack.c.l.b16 %v91
  %v188 = vunpack.c.l.b16 %v92
  %v189 = vunpack.c.l.b16 %v93
  %v190 = vunpack.c.l.b16 %v94
  %v191 = vunpack.c.l.b16 %v95
  %v192 = vunpack.c.l.b16 %v96
  %v193 = vunpack.c.l.b16 %v97
  %v194 = vunpack.c.l.b16 %v98
  %v195 = vunpack.c.l.b16 %v99
  %v196 = vunpack.c.l.b16 %v100
  %v197 = vunpack.c.l.b16 %v101
  %v198 = vunpack.c.l.b16 %v102
  %v199 = vunpack.c.l.b16 %v103
  %v200 = vunpack.c.l.b16 %v104
  %v201 = vunpack.c.l.b16 %v105
  %v202 = vunpack.c.l.b16 %v106
  %v203 = vunpack.c.l.b16 %v107
  %v204 = vunpack.c.l.b16 %v108
  %v205 = vunpack.c.l.b16 %v109
  %v206 = vunpack.c.l.b16 %v110
  %v207 = vunpack.c.l.b16 %v111
  %v208 = vunpack.c.l.b16 %v112
  %v209 = vunpack.c.l.b16 %v113
  %v210 = vunpack.c.l.b16 %v114
  %v211 = vunpack.c.l.b16 %v115
  %v212 = vunpack.c.l.b16 %v116
  %v213 = vunpack.c.l.b16 %v117
  %v214 = vunpack.c.l.b16 %v118
  %v215 = vunpack.c.l.b16 %v119
  %v216 = vunpack.c.l.b16 %v120
  %v217 = vunpack.c.l.b16 %v121
  %v218 = vunpack.c.l.b16 %v122
  %v219 = vunpack.c.l.b16 %v123
  %v220 = vunpack.c.l.b16 %v124
  %v221 = vunpack.c.l.b16 %v125
  %v222 = vunpack.c.l.b16 %v126
  %v223 = vunpack.c.l.b16 %v127
  %v224 = vunpack.c.l.b16 %v128
  %v225 = vunpack.c.l.b16 %v129
  %v226 = vunpack.c.l.b16 %v130
  %v227 = vunpack.c.l.b16 %v131
  %v228 = vpack.c.b16 %v181, %v180
  %v229 = vpack.c.b16 %v183, %v182
  %v230 = vpack.c.b16 %v185, %v184
  %v231 = vpack.c.b16 %v187, %v186
  %v232 = vpack.c.b16 %v189, %v188
  %v233 = vpack.c.b16 %v191, %v190
  %v234 = vpack.c.b16 %v193, %v192
  %v235 = vpack.c.b16 %v195, %v194
  %v236 = vpack.c.b16 %v197, %v196
  %v237 = vpack.c.b16 %v199, %v198
  %v238 = vpack.c.b16 %v201, %v200
  %v239 = vpack.c.b16 %v203, %v202
  %v240 = vpack.c.b16 %v205, %v204
  %v241 = vpack.c.b16 %v207, %v206
  %v242 = vpack.c.b16 %v209, %v208
  %v243 = vpack.c.b16 %v211, %v210
  %v244 = vpack.c.b16 %v213, %v212
  %v245 = vpack.c.b16 %v215, %v214
  %v246 = vpack.c.b16 %v217, %v216
  %v247 = vpack.c.b16 %v219, %v218
  %v248 = vpack.c.b16 %v221, %v220
  %v249 = vpack.c.b16 %v223, %v222
  %v250 = vpack.c.b16 %v225, %v224
  %v251 = vpack.c.b16 %v227, %v226
  %276 = vmatprep.subr.bf16.mxu0 0
  %277 = vmatpush1.bf16.msra.mxu0 %v228
  %278 = vmatprep.subr.bf16.mxu0 0
  %279 = vmatpush1.bf16.msra.mxu0 %v229
  %280 = vmatprep.subr.bf16.mxu0 0
  %281 = vmatpush1.bf16.msra.mxu0 %v230
  %282 = vmatprep.subr.bf16.mxu0 0
  %283 = vmatpush1.bf16.msra.mxu0 %v231
  %284 = vmatprep.subr.bf16.mxu0 0
  %285 = vmatpush1.bf16.msra.mxu0 %v232
  %286 = vmatprep.subr.bf16.mxu0 0
  %287 = vmatpush1.bf16.msra.mxu0 %v233
  %288 = vmatprep.subr.bf16.mxu0 0
  %289 = vmatpush1.bf16.msra.mxu0 %v234
  %290 = vmatprep.subr.bf16.mxu0 0
  %291 = vmatpush1.bf16.msra.mxu0 %v235
  %292 = vmatprep.subr.bf16.mxu0 0
  %293 = vmatpush1.bf16.msra.mxu0 %v236
  %294 = vmatprep.subr.bf16.mxu0 0
  %295 = vmatpush1.bf16.msra.mxu0 %v237
  %296 = vmatprep.subr.bf16.mxu0 0
  %297 = vmatpush1.bf16.msra.mxu0 %v238
  %298 = vmatprep.subr.bf16.mxu0 0
  %299 = vmatpush1.bf16.msra.mxu0 %v239
  %300 = vmatprep.subr.bf16.mxu0 0
  %301 = vmatpush1.bf16.msra.mxu0 %v240
  %302 = vmatprep.subr.bf16.mxu0 0
  %303 = vmatpush1.bf16.msra.mxu0 %v241
  %304 = vmatprep.subr.bf16.mxu0 0
  %305 = vmatpush1.bf16.msra.mxu0 %v242
  %306 = vmatprep.subr.bf16.mxu0 0
  %307 = vmatpush1.bf16.msra.mxu0 %v243
  %308 = vmatprep.mubr.bf16.mxu0 %v79
  %309 = vmatmul.mubr.bf16.gmra.mrb[0].mxu0 %v78
  %v310 = vpop.f32.mrb[0].mxu0
  %v311 = vadd.f32 0.0, %v310
  %v312 = vpop.f32.mrb[0].mxu0
  %v313 = vpop.f32.mrb[0].mxu0
  %v314 = vadd.f32 0.0, %v313
  %v315 = vpop.f32.mrb[0].mxu0
  %316 = vmatprep.mubr.bf16.mxu0 %v82
  %317 = vmatmul.mubr.bf16.gmra.mrb[0].mxu0 %v81
  %v318 = vpop.f32.mrb[0].mxu0
  %v319 = vadd.f32 0.0, %v318
  %v320 = vpop.f32.mrb[0].mxu0
  %v321 = vpop.f32.mrb[0].mxu0
  %v322 = vadd.f32 0.0, %v321
  %v323 = vpop.f32.mrb[0].mxu0
  %324 = vdwg.mxu0
  %325 = vmatprep.subr.bf16.mxu0 0
  %326 = vmatpush1.bf16.msra.mxu0 %v244
  %327 = vmatprep.subr.bf16.mxu0 0
  %328 = vmatpush1.bf16.msra.mxu0 %v245
  %329 = vmatprep.subr.bf16.mxu0 0
  %330 = vmatpush1.bf16.msra.mxu0 %v246
  %331 = vmatprep.subr.bf16.mxu0 0
  %332 = vmatpush1.bf16.msra.mxu0 %v247
  %333 = vmatprep.subr.bf16.mxu0 0
  %334 = vmatpush1.bf16.msra.mxu0 %v248
  %335 = vmatprep.subr.bf16.mxu0 0
  %336 = vmatpush1.bf16.msra.mxu0 %v249
  %337 = vmatprep.subr.bf16.mxu0 0
  %338 = vmatpush1.bf16.msra.mxu0 %v250
  %339 = vmatprep.subr.bf16.mxu0 0
  %340 = vmatpush1.bf16.msra.mxu0 %v251
  %341 = vmatprep.subr.bf16.mxu0 0
  %342 = vmatpush1.bf16.msra.mxu0 0
  %343 = vmatprep.subr.bf16.mxu0 0
  %344 = vmatpush1.bf16.msra.mxu0 0
  %345 = vmatprep.subr.bf16.mxu0 0
  %346 = vmatpush1.bf16.msra.mxu0 0
  %347 = vmatprep.subr.bf16.mxu0 0
  %348 = vmatpush1.bf16.msra.mxu0 0
  %349 = vmatprep.subr.bf16.mxu0 0
  %350 = vmatpush1.bf16.msra.mxu0 0
  %351 = vmatprep.subr.bf16.mxu0 0
  %352 = vmatpush1.bf16.msra.mxu0 0
  %353 = vmatprep.subr.bf16.mxu0 0
  %354 = vmatpush1.bf16.msra.mxu0 0
  %355 = vmatprep.subr.bf16.mxu0 0
  %356 = vmatpush1.bf16.msra.mxu0 0
  %357 = vmatprep.mubr.bf16.mxu0 0
  %358 = vmatmul.mubr.bf16.gmra.mrb[0].mxu0 %v80
  %v359 = vpop.f32.mrb[0].mxu0
  %v360 = vadd.f32 %v311, %v359
  %v361 = vpop.f32.mrb[0].mxu0
  %v362 = vpop.f32.mrb[0].mxu0
  %v363 = vadd.f32 %v314, %v362
  %v364 = vpop.f32.mrb[0].mxu0
  %365 = vmatprep.mubr.bf16.mxu0 0
  %366 = vmatmul.mubr.bf16.gmra.mrb[0].mxu0 %v83
  %v367 = vpop.f32.mrb[0].mxu0
  %v368 = vadd.f32 %v319, %v367
  %v369 = vpop.f32.mrb[0].mxu0
  %v370 = vpop.f32.mrb[0].mxu0
  %v371 = vadd.f32 %v322, %v370
  %v372 = vpop.f32.mrb[0].mxu0
  %373 = vdwg.mxu0
  %v374 = vadd.f32 %v360, %v363
  %v375 = vadd.f32 %v374, %v368
  %v376 = vadd.f32 %v375, %v371
  %v377 = vrot.slane %v376, 4
  %v378 = vadd.f32 %v376, %v377
  %v379 = vrot.slane %v378, 2
  %v380 = vadd.f32 %v378, %v379
  %v381 = vrot.slane %v380, 1
  %v382 = vadd.f32 %v380, %v381
  %v383 = vmul.f32 %v360, %v360
  %v384 = vmul.f32 %v363, %v363
  %v385 = vmul.f32 %v368, %v368
  %v386 = vmul.f32 %v371, %v371
  %v387 = vadd.f32 %v383, %v384
  %v388 = vadd.f32 %v387, %v385
  %v389 = vadd.f32 %v388, %v386
  %v390 = vrot.slane %v389, 4
  %v391 = vadd.f32 %v389, %v390
  %v392 = vrot.slane %v391, 2
  %v393 = vadd.f32 %v391, %v392
  %v394 = vrot.slane %v393, 1
  %v395 = vadd.f32 %v393, %v394
  %v396 = vsel %vm36, %v382, %v395
  %397 = vrot.lane.b32.xlu0 %v396, 8
  %v398 = vpop.permute.xlu0 %397
  %v399 = vadd.f32 %v396, %v398
  %400 = vrot.lane.b32.xlu0 %v399, 16
  %v401 = vpop.permute.xlu0 %400
  %v402 = vadd.f32 %v399, %v401
  %403 = vrot.lane.b32.xlu0 %v402, 32
  %v404 = vpop.permute.xlu0 %403
  %v405 = vadd.f32 %v402, %v404
  %406 = vrot.lane.b32.xlu0 %v405, 64
  %v407 = vpop.permute.xlu0 %406
  %v408 = vadd.f32 %v405, %v407
  %v409 = vmul.f32 %v408, 0.001953125
  %v410 = vmul.f32 %v409, %v409
  %v412 = vrot.slane %v410, 7
  %v414 = vsub.f32 %v409, %v412
  %v415 = vadd.f32 %v414, 1e-05
  %v416 = vrsqrt.pop %v415
  %v418 = vrot.slane %v416, 1
  %v420 = vmul.f32 %v26, %v418
  %v421 = vmul.f32 %v409, %v420
  %v422 = vsub.f32 %v27, %v421
  %v423 = vlaneseq
  %v424 = vshrl.u32 %v423, 7
  %v425 = vsub.s32 0, %v424
  %v426 = vrot.slane %v420, %v425
  %v427 = vmul.f32 %v360, %v426
  %v428 = vmul.f32 %v363, %v426
  %v429 = vmul.f32 %v368, %v426
  %v430 = vmul.f32 %v371, %v426
  %v431 = vlaneseq
  %v432 = vshrl.u32 %v431, 7
  %v433 = vsub.s32 0, %v432
  %v434 = vrot.slane %v422, %v433
  %v435 = vadd.f32 %v427, %v434
  %v436 = vadd.f32 %v428, %v434
  %v437 = vadd.f32 %v429, %v434
  %v438 = vadd.f32 %v430, %v434
  %v439 = vmax.f32 %v435, 0.0
  %v440 = vmax.f32 %v436, 0.0
  %v441 = vmax.f32 %v437, 0.0
  %v442 = vmax.f32 %v438, 0.0
  %v443 = vld [vmem:[%s3 + $0x2] sm:$0x1]
  %v444 = vld [vmem:[%s3 + $0x3] sm:$0x1]
  %445 = vst [vmem:[#allocation2 + $0x8] sm:$0xff] %v439
  %446 = vst [vmem:[#allocation2 + $0x20] sm:$0xff] %v440
  %447 = vst [vmem:[#allocation2 + $0x38] sm:$0xff] %v441
  %448 = vst [vmem:[#allocation2 + $0x50] sm:$0xff] %v442
  %v453 = vrot.slane %v439, 7
  %v454 = vrot.slane %v440, 7
  %v455 = vsel %vm36, %v453, %v454
  %v456 = vrot.slane %v441, 7
  %v457 = vrot.slane %v442, 7
  %v458 = vsel %vm36, %v456, %v457
  %463 = vst [vmem:[#allocation2] sm:$0xfe] %v453
  %464 = vst [vmem:[#allocation2 + $0x18] sm:$0xff] %v455
  %465 = vst [vmem:[#allocation2 + $0x30] sm:$0xfe] %v456
  %466 = vst [vmem:[#allocation2 + $0x48] sm:$0xff] %v458
  %v467 = vrot.slane %v439, 1
  %v468 = vrot.slane %v440, 1
  %v469 = vsel %vm51, %v467, %v468
  %v470 = vrot.slane %v441, 1
  %v471 = vrot.slane %v442, 1
  %v472 = vsel %vm51, %v470, %v471
  %477 = vst [vmem:[#allocation2 + $0x10] sm:$0xff] %v469
  %478 = vst [vmem:[#allocation2 + $0x28] sm:$0x7f] %v468
  %479 = vst [vmem:[#allocation2 + $0x40] sm:$0xff] %v472
  %480 = vst [vmem:[#allocation2 + $0x58] sm:$0x7f] %v471
  %v481 = vld [vmem:[#allocation2] sm:$0xff]
  %v482 = vld [vmem:[#allocation2 + $0x8] sm:$0xff]
  %v483 = vld [vmem:[#allocation2 + $0x10] sm:$0xff]
  %v484 = vld [vmem:[#allocation2 + $0x18] sm:$0xff]
  %v485 = vld [vmem:[#allocation2 + $0x20] sm:$0xff]
  %v486 = vld [vmem:[#allocation2 + $0x28] sm:$0xff]
  %v487 = vld [vmem:[#allocation2 + $0x30] sm:$0xff]
  %v488 = vld [vmem:[#allocation2 + $0x38] sm:$0xff]
  %v489 = vld [vmem:[#allocation2 + $0x40] sm:$0xff]
  %v490 = vld [vmem:[#allocation2 + $0x48] sm:$0xff]
  %v491 = vld [vmem:[#allocation2 + $0x50] sm:$0xff]
  %v492 = vld [vmem:[#allocation2 + $0x58] sm:$0xff]
  %v493 = vpack.c.bf16 %v484, %v481
  %v494 = vpack.c.bf16 %v485, %v482
  %v495 = vpack.c.bf16 %v486, %v483
  %v496 = vpack.c.bf16 %v490, %v487
  %v497 = vpack.c.bf16 %v491, %v488
  %v498 = vpack.c.bf16 %v492, %v489
  %v499 = vld [vmem:[%s2] sm:$0xf]
  %v500 = vld [vmem:[%s2 + $0x4] sm:$0xf]
  %v501 = vld [vmem:[%s2 + $0x8] sm:$0xf]
  %v502 = vld [vmem:[%s2 + $0xc] sm:$0xf]
  %v503 = vld [vmem:[%s2 + $0x10] sm:$0xf]
  %v504 = vld [vmem:[%s2 + $0x14] sm:$0xf]
  %v505 = vld [vmem:[%s2 + $0x18] sm:$0xf]
  %v506 = vld [vmem:[%s2 + $0x1c] sm:$0xf]
  %v507 = vld [vmem:[%s2 + $0x20] sm:$0xf]
  %v508 = vld [vmem:[%s2 + $0x24] sm:$0xf]
  %v509 = vld [vmem:[%s2 + $0x28] sm:$0xf]
  %v510 = vld [vmem:[%s2 + $0x2c] sm:$0xf]
  %v511 = vld [vmem:[%s2 + $0x30] sm:$0xf]
  %v512 = vld [vmem:[%s2 + $0x34] sm:$0xf]
  %v513 = vld [vmem:[%s2 + $0x38] sm:$0xf]
  %v514 = vld [vmem:[%s2 + $0x3c] sm:$0xf]
  %v515 = vld [vmem:[%s2 + $0x40] sm:$0xf]
  %v516 = vld [vmem:[%s2 + $0x44] sm:$0xf]
  %v517 = vld [vmem:[%s2 + $0x48] sm:$0xf]
  %v518 = vld [vmem:[%s2 + $0x4c] sm:$0xf]
  %v519 = vld [vmem:[%s2 + $0x50] sm:$0xf]
  %v520 = vld [vmem:[%s2 + $0x54] sm:$0xf]
  %v521 = vld [vmem:[%s2 + $0x58] sm:$0xf]
  %v522 = vld [vmem:[%s2 + $0x5c] sm:$0xf]
  %v523 = vld [vmem:[%s2 + $0x60] sm:$0xf]
  %v524 = vld [vmem:[%s2 + $0x64] sm:$0xf]
  %v525 = vld [vmem:[%s2 + $0x68] sm:$0xf]
  %v526 = vld [vmem:[%s2 + $0x6c] sm:$0xf]
  %v527 = vld [vmem:[%s2 + $0x70] sm:$0xf]
  %v528 = vld [vmem:[%s2 + $0x74] sm:$0xf]
  %v529 = vld [vmem:[%s2 + $0x78] sm:$0xf]
  %v530 = vld [vmem:[%s2 + $0x7c] sm:$0xf]
  %v531 = vld [vmem:[%s2 + $0x80] sm:$0xf]
  %v532 = vld [vmem:[%s2 + $0x84] sm:$0xf]
  %v533 = vld [vmem:[%s2 + $0x88] sm:$0xf]
  %v534 = vld [vmem:[%s2 + $0x8c] sm:$0xf]
  %v535 = vld [vmem:[%s2 + $0x90] sm:$0xf]
  %v536 = vld [vmem:[%s2 + $0x94] sm:$0xf]
  %v537 = vld [vmem:[%s2 + $0x98] sm:$0xf]
  %v538 = vld [vmem:[%s2 + $0x9c] sm:$0xf]
  %v539 = vld [vmem:[%s2 + $0xa0] sm:$0xf]
  %v540 = vld [vmem:[%s2 + $0xa4] sm:$0xf]
  %v541 = vld [vmem:[%s2 + $0xa8] sm:$0xf]
  %v542 = vld [vmem:[%s2 + $0xac] sm:$0xf]
  %v543 = vld [vmem:[%s2 + $0xb0] sm:$0xf]
  %v544 = vld [vmem:[%s2 + $0xb4] sm:$0xf]
  %v545 = vld [vmem:[%s2 + $0xb8] sm:$0xf]
  %v546 = vld [vmem:[%s2 + $0xbc] sm:$0xf]
  %v595 = vunpack.c.l.b16 %v499
  %v596 = vunpack.c.l.b16 %v500
  %v597 = vunpack.c.l.b16 %v501
  %v598 = vunpack.c.l.b16 %v502
  %v599 = vunpack.c.l.b16 %v503
  %v600 = vunpack.c.l.b16 %v504
  %v601 = vunpack.c.l.b16 %v505
  %v602 = vunpack.c.l.b16 %v506
  %v603 = vunpack.c.l.b16 %v507
  %v604 = vunpack.c.l.b16 %v508
  %v605 = vunpack.c.l.b16 %v509
  %v606 = vunpack.c.l.b16 %v510
  %v607 = vunpack.c.l.b16 %v511
  %v608 = vunpack.c.l.b16 %v512
  %v609 = vunpack.c.l.b16 %v513
  %v610 = vunpack.c.l.b16 %v514
  %v611 = vunpack.c.l.b16 %v515
  %v612 = vunpack.c.l.b16 %v516
  %v613 = vunpack.c.l.b16 %v517
  %v614 = vunpack.c.l.b16 %v518
  %v615 = vunpack.c.l.b16 %v519
  %v616 = vunpack.c.l.b16 %v520
  %v617 = vunpack.c.l.b16 %v521
  %v618 = vunpack.c.l.b16 %v522
  %v619 = vunpack.c.l.b16 %v523
  %v620 = vunpack.c.l.b16 %v524
  %v621 = vunpack.c.l.b16 %v525
  %v622 = vunpack.c.l.b16 %v526
  %v623 = vunpack.c.l.b16 %v527
  %v624 = vunpack.c.l.b16 %v528
  %v625 = vunpack.c.l.b16 %v529
  %v626 = vunpack.c.l.b16 %v530
  %v627 = vunpack.c.l.b16 %v531
  %v628 = vunpack.c.l.b16 %v532
  %v629 = vunpack.c.l.b16 %v533
  %v630 = vunpack.c.l.b16 %v534
  %v631 = vunpack.c.l.b16 %v535
  %v632 = vunpack.c.l.b16 %v536
  %v633 = vunpack.c.l.b16 %v537
  %v634 = vunpack.c.l.b16 %v538
  %v635 = vunpack.c.l.b16 %v539
  %v636 = vunpack.c.l.b16 %v540
  %v637 = vunpack.c.l.b16 %v541
  %v638 = vunpack.c.l.b16 %v542
  %v639 = vunpack.c.l.b16 %v543
  %v640 = vunpack.c.l.b16 %v544
  %v641 = vunpack.c.l.b16 %v545
  %v642 = vunpack.c.l.b16 %v546
  %v643 = vpack.c.b16 %v596, %v595
  %v644 = vpack.c.b16 %v598, %v597
  %v645 = vpack.c.b16 %v600, %v599
  %v646 = vpack.c.b16 %v602, %v601
  %v647 = vpack.c.b16 %v604, %v603
  %v648 = vpack.c.b16 %v606, %v605
  %v649 = vpack.c.b16 %v608, %v607
  %v650 = vpack.c.b16 %v610, %v609
  %v651 = vpack.c.b16 %v612, %v611
  %v652 = vpack.c.b16 %v614, %v613
  %v653 = vpack.c.b16 %v616, %v615
  %v654 = vpack.c.b16 %v618, %v617
  %v655 = vpack.c.b16 %v620, %v619
  %v656 = vpack.c.b16 %v622, %v621
  %v657 = vpack.c.b16 %v624, %v623
  %v658 = vpack.c.b16 %v626, %v625
  %v659 = vpack.c.b16 %v628, %v627
  %v660 = vpack.c.b16 %v630, %v629
  %v661 = vpack.c.b16 %v632, %v631
  %v662 = vpack.c.b16 %v634, %v633
  %v663 = vpack.c.b16 %v636, %v635
  %v664 = vpack.c.b16 %v638, %v637
  %v665 = vpack.c.b16 %v640, %v639
  %v666 = vpack.c.b16 %v642, %v641
  %691 = vmatprep.subr.bf16.mxu0 0
  %692 = vmatpush1.bf16.msra.mxu0 %v643
  %693 = vmatprep.subr.bf16.mxu0 0
  %694 = vmatpush1.bf16.msra.mxu0 %v644
  %695 = vmatprep.subr.bf16.mxu0 0
  %696 = vmatpush1.bf16.msra.mxu0 %v645
  %697 = vmatprep.subr.bf16.mxu0 0
  %698 = vmatpush1.bf16.msra.mxu0 %v646
  %699 = vmatprep.subr.bf16.mxu0 0
  %700 = vmatpush1.bf16.msra.mxu0 %v647
  %701 = vmatprep.subr.bf16.mxu0 0
  %702 = vmatpush1.bf16.msra.mxu0 %v648
  %703 = vmatprep.subr.bf16.mxu0 0
  %704 = vmatpush1.bf16.msra.mxu0 %v649
  %705 = vmatprep.subr.bf16.mxu0 0
  %706 = vmatpush1.bf16.msra.mxu0 %v650
  %707 = vmatprep.subr.bf16.mxu0 0
  %708 = vmatpush1.bf16.msra.mxu0 %v651
  %709 = vmatprep.subr.bf16.mxu0 0
  %710 = vmatpush1.bf16.msra.mxu0 %v652
  %711 = vmatprep.subr.bf16.mxu0 0
  %712 = vmatpush1.bf16.msra.mxu0 %v653
  %713 = vmatprep.subr.bf16.mxu0 0
  %714 = vmatpush1.bf16.msra.mxu0 %v654
  %715 = vmatprep.subr.bf16.mxu0 0
  %716 = vmatpush1.bf16.msra.mxu0 %v655
  %717 = vmatprep.subr.bf16.mxu0 0
  %718 = vmatpush1.bf16.msra.mxu0 %v656
  %719 = vmatprep.subr.bf16.mxu0 0
  %720 = vmatpush1.bf16.msra.mxu0 %v657
  %721 = vmatprep.subr.bf16.mxu0 0
  %722 = vmatpush1.bf16.msra.mxu0 %v658
  %723 = vmatprep.mubr.bf16.mxu0 %v494
  %724 = vmatmul.mubr.bf16.gmra.mrb[0].mxu0 %v493
  %v725 = vpop.f32.mrb[0].mxu0
  %v726 = vadd.f32 0.0, %v725
  %v727 = vpop.f32.mrb[0].mxu0
  %v728 = vpop.f32.mrb[0].mxu0
  %v729 = vadd.f32 0.0, %v728
  %v730 = vpop.f32.mrb[0].mxu0
  %731 = vmatprep.mubr.bf16.mxu0 %v497
  %732 = vmatmul.mubr.bf16.gmra.mrb[0].mxu0 %v496
  %v733 = vpop.f32.mrb[0].mxu0
  %v734 = vadd.f32 0.0, %v733
  %v735 = vpop.f32.mrb[0].mxu0
  %v736 = vpop.f32.mrb[0].mxu0
  %v737 = vadd.f32 0.0, %v736
  %v738 = vpop.f32.mrb[0].mxu0
  %739 = vdwg.mxu0
  %740 = vmatprep.subr.bf16.mxu0 0
  %741 = vmatpush1.bf16.msra.mxu0 %v659
  %742 = vmatprep.subr.bf16.mxu0 0
  %743 = vmatpush1.bf16.msra.mxu0 %v660
  %744 = vmatprep.subr.bf16.mxu0 0
  %745 = vmatpush1.bf16.msra.mxu0 %v661
  %746 = vmatprep.subr.bf16.mxu0 0
  %747 = vmatpush1.bf16.msra.mxu0 %v662
  %748 = vmatprep.subr.bf16.mxu0 0
  %749 = vmatpush1.bf16.msra.mxu0 %v663
  %750 = vmatprep.subr.bf16.mxu0 0
  %751 = vmatpush1.bf16.msra.mxu0 %v664
  %752 = vmatprep.subr.bf16.mxu0 0
  %753 = vmatpush1.bf16.msra.mxu0 %v665
  %754 = vmatprep.subr.bf16.mxu0 0
  %755 = vmatpush1.bf16.msra.mxu0 %v666
  %756 = vmatprep.subr.bf16.mxu0 0
  %757 = vmatpush1.bf16.msra.mxu0 0
  %758 = vmatprep.subr.bf16.mxu0 0
  %759 = vmatpush1.bf16.msra.mxu0 0
  %760 = vmatprep.subr.bf16.mxu0 0
  %761 = vmatpush1.bf16.msra.mxu0 0
  %762 = vmatprep.subr.bf16.mxu0 0
  %763 = vmatpush1.bf16.msra.mxu0 0
  %764 = vmatprep.subr.bf16.mxu0 0
  %765 = vmatpush1.bf16.msra.mxu0 0
  %766 = vmatprep.subr.bf16.mxu0 0
  %767 = vmatpush1.bf16.msra.mxu0 0
  %768 = vmatprep.subr.bf16.mxu0 0
  %769 = vmatpush1.bf16.msra.mxu0 0
  %770 = vmatprep.subr.bf16.mxu0 0
  %771 = vmatpush1.bf16.msra.mxu0 0
  %772 = vmatprep.mubr.bf16.mxu0 0
  %773 = vmatmul.mubr.bf16.gmra.mrb[0].mxu0 %v495
  %v774 = vpop.f32.mrb[0].mxu0
  %v775 = vadd.f32 %v726, %v774
  %v776 = vpop.f32.mrb[0].mxu0
  %v777 = vpop.f32.mrb[0].mxu0
  %v778 = vadd.f32 %v729, %v777
  %v779 = vpop.f32.mrb[0].mxu0
  %780 = vmatprep.mubr.bf16.mxu0 0
  %781 = vmatmul.mubr.bf16.gmra.mrb[0].mxu0 %v498
  %v782 = vpop.f32.mrb[0].mxu0
  %v783 = vadd.f32 %v734, %v782
  %v784 = vpop.f32.mrb[0].mxu0
  %v785 = vpop.f32.mrb[0].mxu0
  %v786 = vadd.f32 %v737, %v785
  %v787 = vpop.f32.mrb[0].mxu0
  %788 = vdwg.mxu0
  %v789 = vadd.f32 %v775, %v778
  %v790 = vadd.f32 %v789, %v783
  %v791 = vadd.f32 %v790, %v786
  %v792 = vrot.slane %v791, 4
  %v793 = vadd.f32 %v791, %v792
  %v794 = vrot.slane %v793, 2
  %v795 = vadd.f32 %v793, %v794
  %v796 = vrot.slane %v795, 1
  %v797 = vadd.f32 %v795, %v796
  %v798 = vmul.f32 %v775, %v775
  %v799 = vmul.f32 %v778, %v778
  %v800 = vmul.f32 %v783, %v783
  %v801 = vmul.f32 %v786, %v786
  %v802 = vadd.f32 %v798, %v799
  %v803 = vadd.f32 %v802, %v800
  %v804 = vadd.f32 %v803, %v801
  %v805 = vrot.slane %v804, 4
  %v806 = vadd.f32 %v804, %v805
  %v807 = vrot.slane %v806, 2
  %v808 = vadd.f32 %v806, %v807
  %v809 = vrot.slane %v808, 1
  %v810 = vadd.f32 %v808, %v809
  %v811 = vsel %vm36, %v797, %v810
  %812 = vrot.lane.b32.xlu0 %v811, 8
  %v813 = vpop.permute.xlu0 %812
  %v814 = vadd.f32 %v811, %v813
  %815 = vrot.lane.b32.xlu0 %v814, 16
  %v816 = vpop.permute.xlu0 %815
  %v817 = vadd.f32 %v814, %v816
  %818 = vrot.lane.b32.xlu0 %v817, 32
  %v819 = vpop.permute.xlu0 %818
  %v820 = vadd.f32 %v817, %v819
  %821 = vrot.lane.b32.xlu0 %v820, 64
  %v822 = vpop.permute.xlu0 %821
  %v823 = vadd.f32 %v820, %v822
  %v824 = vmul.f32 %v823, 0.001953125
  %v825 = vmul.f32 %v824, %v824
  %v827 = vrot.slane %v825, 7
  %v829 = vsub.f32 %v824, %v827
  %v830 = vadd.f32 %v829, 1e-05
  %v831 = vrsqrt.pop %v830
  %v833 = vrot.slane %v831, 1
  %v835 = vmul.f32 %v443, %v833
  %v836 = vmul.f32 %v824, %v835
  %v837 = vsub.f32 %v444, %v836
  %v838 = vlaneseq
  %v839 = vshrl.u32 %v838, 7
  %v840 = vsub.s32 0, %v839
  %v841 = vrot.slane %v835, %v840
  %v842 = vmul.f32 %v775, %v841
  %v843 = vmul.f32 %v778, %v841
  %v844 = vmul.f32 %v783, %v841
  %v845 = vmul.f32 %v786, %v841
  %v846 = vlaneseq
  %v847 = vshrl.u32 %v846, 7
  %v848 = vsub.s32 0, %v847
  %v849 = vrot.slane %v837, %v848
  %v850 = vadd.f32 %v842, %v849
  %v851 = vadd.f32 %v843, %v849
  %v852 = vadd.f32 %v844, %v849
  %v853 = vadd.f32 %v845, %v849
  %v854 = vadd.f32 %v850, %v22
  %v855 = vadd.f32 %v851, %v23
  %v856 = vadd.f32 %v852, %v24
  %v857 = vadd.f32 %v853, %v25
  %v858 = vmax.f32 %v854, 0.0
  %v859 = vmax.f32 %v855, 0.0
  %v860 = vmax.f32 %v856, 0.0
  %v861 = vmax.f32 %v857, 0.0
  %862 = vst [vmem:[%s4] sm:$0xff] %v858
  %863 = vst [vmem:[%s4 + $0x8] sm:$0xff] %v859
  %864 = vst [vmem:[%s4 + $0x10] sm:$0xff] %v860
  %865 = vst [vmem:[%s4 + $0x18] sm:$0xff] %v861
  // Predicated region
  $region18: #{basic_block_forward.1} parent=0 // pred_check
    _
  $region19: #{basic_block_forward.1} parent=0 // pred_check_branch
    %867 = sbr.rel (0) target = $region21
  $region20: #{basic_block_forward.1} parent=0 // pred_region
    _
  $region21: #{basic_block_forward.1} parent=0 // pred_fallthru
    _
  // Predicated region
  $region22: #{basic_block_forward.1} parent=0 // pred_check
    _
  $region23: #{basic_block_forward.1} parent=0 // pred_check_branch
    %869 = sbr.rel (0) target = $region25
  $region24: #{basic_block_forward.1} parent=0 // pred_region
    _
  $region25: #{basic_block_forward.1} parent=0 // pred_fallthru
    _

</llo_original>
